<compile_context>
chip_gen: v5e
topology: v5e:2x2
jax: 0.10.0
libtpu: 0.0.40
codegen_flags: <defaults>
</compile_context>

<pallas_src>
import functools

import jax
import jax.numpy as jnp
from jax.experimental import pallas as pl
from jax.experimental.pallas import tpu as pltpu


def _render_kernel(rgb_ref, dens_ref, z_ref, dirn_ref,
                   w_ref, packed_ref, *, white_bkgd):
    f32 = jnp.float32

    dens = dens_ref[...].astype(f32)          # [TB, S]
    z = z_ref[...].astype(f32)                # [TB, S]
    dir_norm = dirn_ref[...].astype(f32)      # [TB, 1]
    TB, S = z.shape

    # dists[i] = z[i+1] - z[i], last entry = 1e10, scaled by ||dir||.
    dists = jnp.concatenate(
        [z[:, 1:] - z[:, :-1], jnp.full((TB, 1), 1e10, dtype=f32)], axis=-1)
    dists = dists * dir_norm                                       # [TB, S]

    # alpha = 1 - exp(-relu(density) * dists)
    alpha = 1.0 - jnp.exp(-jnp.maximum(dens, 0.0) * dists)         # [TB, S]
    terms = 1.0 - alpha + 1e-10                                    # [TB, S]

    # Exclusive prefix product of `terms` along the lane (sample) axis via a
    # Hillis-Steele scan: pure VPU/XLU, exact f32, no MXU precision games.
    # trans[:, i] = prod_{j < i} terms[:, j]
    t = jnp.concatenate([jnp.ones((TB, 1), f32), terms[:, :-1]], axis=-1)
    off = 1
    while off < S:
        t = t * jnp.concatenate(
            [jnp.ones((TB, off), f32), t[:, :-off]], axis=-1)
        off *= 2
    trans = t                                                      # [TB, S]

    weights = alpha * trans                                        # [TB, S]
    w_ref[...] = weights.astype(w_ref.dtype)

    def _sigmoid(x):
        # One EUP transcendental per element (tanh) instead of exp + recip.
        return 0.5 + 0.5 * jnp.tanh(0.5 * x)

    # Per-channel weighted sums (batch in sublanes, reduce over lanes).
    r_map = jnp.sum(weights * _sigmoid(rgb_ref[0].astype(f32)),
                    axis=-1, keepdims=True)
    g_map = jnp.sum(weights * _sigmoid(rgb_ref[1].astype(f32)),
                    axis=-1, keepdims=True)
    b_map = jnp.sum(weights * _sigmoid(rgb_ref[2].astype(f32)),
                    axis=-1, keepdims=True)

    depth = jnp.sum(weights * z, axis=-1, keepdims=True)           # [TB, 1]
    acc = jnp.sum(weights, axis=-1, keepdims=True)                 # [TB, 1]
    disp = 1.0 / jnp.maximum(jnp.full_like(depth, 1e-10), depth / acc)

    rgb_map = jnp.concatenate([r_map, g_map, b_map], axis=-1)      # [TB, 3]
    if white_bkgd:
        rgb_map = rgb_map + (1.0 - acc)

    # One packed lane-chunk per ray: [r, g, b, depth, acc, disp, 0, 0].
    packed = jnp.concatenate(
        [rgb_map, depth, acc, disp, jnp.zeros((TB, 2), f32)], axis=-1)
    packed_ref[...] = packed                                       # [TB, 8]


def _pick_tb(B, max_tb=512, min_steps=4):
    """Largest tile (multiple of 8, <= max_tb) giving >= min_steps grid steps."""
    tb = min(max_tb, B)
    tb = max(8, (tb // 8) * 8)
    while tb > 8 and -(-B // tb) < min_steps:
        tb = max(8, (tb // 2 // 8) * 8)
    return tb


def render_pallas(rgb_raw, density, z_vals, direction, *, white_bkgd=False,
                  rgb_channel_major=False, tb=None):
    """NeRF volume rendering (eval / noise-free path).

    rgb_raw: [B, S, 3] (spec layout) or [3, B, S] if rgb_channel_major=True.
    density: [B, S, 1], z_vals: [B, S], direction: [B, 3].
    """
    if rgb_channel_major:
        rgb_cm = rgb_raw                                  # [3, B, S]
    else:
        # Prefer the producer emitting channel-major [3, B, S]: this transpose
        # is an extra full HBM pass over the largest input if XLA can't fuse it.
        rgb_cm = jnp.transpose(rgb_raw, (2, 0, 1))
    _, B, S = rgb_cm.shape

    dens = jnp.squeeze(density, -1)                       # [B, S] (free reshape)
    z = z_vals
    # Fold ||dir|| upstream: tiny [B, 3] -> [B, 1] op, drops a narrow block.
    dir_norm = jnp.sqrt(jnp.sum(direction.astype(jnp.float32) ** 2,
                                axis=-1, keepdims=True))  # [B, 1]

    if tb is None:
        tb = _pick_tb(B)
    grid_b = -(-B // tb)
    B_pad = grid_b * tb
    if B_pad != B:
        pad = B_pad - B
        rgb_cm = jnp.pad(rgb_cm, ((0, 0), (0, pad), (0, 0)))
        dens = jnp.pad(dens, ((0, pad), (0, 0)))
        z = jnp.pad(z, ((0, pad), (0, 0)))
        dir_norm = jnp.pad(dir_norm, ((0, pad), (0, 0)))

    kernel = functools.partial(_render_kernel, white_bkgd=white_bkgd)

    out_shapes = (
        jax.ShapeDtypeStruct((B_pad, S), jnp.float32),    # weights
        jax.ShapeDtypeStruct((B_pad, 8), jnp.float32),    # packed per-ray outputs
    )
    in_specs = [
        pl.BlockSpec((3, tb, S), lambda i: (0, i, 0)),    # rgb  [3, B, S]
        pl.BlockSpec((tb, S), lambda i: (i, 0)),          # density
        pl.BlockSpec((tb, S), lambda i: (i, 0)),          # z_vals
        pl.BlockSpec((tb, 1), lambda i: (i, 0)),          # ||dir||
    ]
    out_specs = (
        pl.BlockSpec((tb, S), lambda i: (i, 0)),
        pl.BlockSpec((tb, 8), lambda i: (i, 0)),
    )

    weights, packed = pl.pallas_call(
        kernel,
        out_shape=out_shapes,
        grid=(grid_b,),
        in_specs=in_specs,
        out_specs=out_specs,
        compiler_params=pltpu.CompilerParams(
            dimension_semantics=("parallel",)),
    )(rgb_cm, dens, z, dir_norm)

    weights = weights[:B]
    packed = packed[:B]
    return {
        "rgb": packed[:, 0:3],
        "weights": weights,
        "depth": packed[:, 3],
        "acc": packed[:, 4],
        "disp": packed[:, 5],
    }


def render_ref(rgb_raw, density, z_vals, direction, white_bkgd=False):
    """Pure-JAX reference mirroring the PyTorch forward (eval mode), all f32
    elementwise ops (no matmul, so not subject to TPU bf16 matmul defaults)."""
    B = z_vals.shape[0]
    dists = jnp.concatenate(
        [z_vals[:, 1:] - z_vals[:, :-1],
         jnp.full((B, 1), 1e10, dtype=z_vals.dtype)], axis=-1)
    dists = dists * jnp.linalg.norm(direction, axis=-1, keepdims=True)
    rgb = jax.nn.sigmoid(rgb_raw)
    alpha = 1.0 - jnp.exp(-jax.nn.relu(density[..., 0]) * dists)
    cp = jnp.cumprod(
        jnp.concatenate([jnp.ones_like(alpha[:, :1]),
                         1.0 - alpha + 1e-10], axis=-1), axis=-1)[:, :-1]
    weights = alpha * cp
    rgb_map = jnp.sum(weights[..., None] * rgb, axis=1)
    depth = jnp.sum(weights * z_vals, axis=-1)
    acc = jnp.sum(weights, axis=-1)
    disp = 1.0 / jnp.maximum(1e-10 * jnp.ones_like(depth), depth / acc)
    if white_bkgd:
        rgb_map = rgb_map + (1.0 - acc[..., None])
    return {"rgb": rgb_map, "weights": weights, "depth": depth,
            "acc": acc, "disp": disp}


if __name__ == "__main__":
    B, S = 128, 64
    key = jax.random.PRNGKey(0)
    k1, k2, k3 = jax.random.split(key, 3)

    # Producer emits channel-major rgb [3, B, S] -> no relayout before the kernel.
    rgb_cm = jax.random.normal(k1, (3, B, S), dtype=jnp.float32)
    density = jax.random.normal(k2, (B, S, 1), dtype=jnp.float32)
    # Monotonically increasing depths along each ray (near=2.0, far=6.0).
    z_vals = jnp.broadcast_to(
        jnp.linspace(2.0, 6.0, S, dtype=jnp.float32)[None, :], (B, S))
    direction = jax.random.normal(k3, (B, 3), dtype=jnp.float32)

    out = render_pallas(rgb_cm, density, z_vals, direction,
                        white_bkgd=False, rgb_channel_major=True)
    out = jax.tree_util.tree_map(jax.block_until_ready, out)

    # Reference consumes the spec layout [B, S, 3].
    rgb_raw = jnp.transpose(rgb_cm, (1, 2, 0))
    ref = render_ref(rgb_raw, density, z_vals, direction, white_bkgd=False)
    for name in ("rgb", "weights", "depth", "acc", "disp"):
        assert jnp.allclose(out[name], ref[name], rtol=2e-3, atol=1e-5), name

    print("KERNEL_OK")
</pallas_src>

<mosaic_0001>
module attributes {stable_mosaic.version = 11 : i64} {
  func.func @_render_kernel(%arg0: i32, %arg1: memref<3x32x64xf32, #tpu.memory_space<vmem>>, %arg2: memref<32x64xf32, #tpu.memory_space<vmem>>, %arg3: memref<32x64xf32, #tpu.memory_space<vmem>>, %arg4: memref<32x1xf32, #tpu.memory_space<vmem>>, %arg5: memref<32x64xf32, #tpu.memory_space<vmem>>, %arg6: memref<32x8xf32, #tpu.memory_space<vmem>>) attributes {dimension_semantics = [#tpu.dimension_semantics<parallel>], iteration_bounds = array<i64: 4>, scalar_prefetch = 0 : i64, scratch_operands = 0 : i64, tpu.core_type = #tpu.core_type<tc>, window_params = [{transform_indices = @transform_0, window_bounds = array<i64: 3, 32, 64>}, {transform_indices = @transform_1, window_bounds = array<i64: 32, 64>}, {transform_indices = @transform_2, window_bounds = array<i64: 32, 64>}, {transform_indices = @transform_3, window_bounds = array<i64: 32, 1>}, {transform_indices = @transform_4, window_bounds = array<i64: 32, 64>}, {transform_indices = @transform_5, window_bounds = array<i64: 32, 8>}]} {
    %c0 = arith.constant 0 : index
    %c0_0 = arith.constant 0 : index
    %0 = vector.load %arg2[%c0, %c0_0] : memref<32x64xf32, #tpu.memory_space<vmem>>, vector<32x64xf32>
    %c0_1 = arith.constant 0 : index
    %c0_2 = arith.constant 0 : index
    %1 = vector.load %arg3[%c0_1, %c0_2] : memref<32x64xf32, #tpu.memory_space<vmem>>, vector<32x64xf32>
    %c0_3 = arith.constant 0 : index
    %c0_4 = arith.constant 0 : index
    %2 = vector.load %arg4[%c0_3, %c0_4] : memref<32x1xf32, #tpu.memory_space<vmem>>, vector<32x1xf32>
    %3 = vector.extract_strided_slice %1 {offsets = [0, 1], sizes = [32, 63], strides = [1, 1]} : vector<32x64xf32> to vector<32x63xf32>
    %4 = vector.extract_strided_slice %1 {offsets = [0, 0], sizes = [32, 63], strides = [1, 1]} : vector<32x64xf32> to vector<32x63xf32>
    %5 = arith.subf %3, %4 : vector<32x63xf32>
    %cst = arith.constant 1.000000e+10 : f32
    %6 = vector.broadcast %cst : f32 to vector<32x1xf32>
    %7 = tpu.concatenate %5, %6 in 1 : vector<32x63xf32>, vector<32x1xf32> -> vector<32x64xf32>
    %8 = vector.broadcast %2 : vector<32x1xf32> to vector<32x64xf32>
    %9 = arith.mulf %7, %8 : vector<32x64xf32>
    %cst_5 = arith.constant 0.000000e+00 : f32
    %10 = vector.broadcast %cst_5 : f32 to vector<32x64xf32>
    %11 = arith.maximumf %0, %10 : vector<32x64xf32>
    %cst_6 = arith.constant 0.000000e+00 : f32
    %12 = vector.broadcast %cst_6 : f32 to vector<32x64xf32>
    %13 = arith.subf %12, %11 : vector<32x64xf32>
    %14 = arith.mulf %13, %9 : vector<32x64xf32>
    %15 = math.exp %14 : vector<32x64xf32>
    %cst_7 = arith.constant 1.000000e+00 : f32
    %16 = vector.broadcast %cst_7 : f32 to vector<32x64xf32>
    %17 = arith.subf %16, %15 : vector<32x64xf32>
    %cst_8 = arith.constant 1.000000e+00 : f32
    %18 = vector.broadcast %cst_8 : f32 to vector<32x64xf32>
    %19 = arith.subf %18, %17 : vector<32x64xf32>
    %cst_9 = arith.constant 1.000000e-10 : f32
    %20 = vector.broadcast %cst_9 : f32 to vector<32x64xf32>
    %21 = arith.addf %19, %20 : vector<32x64xf32>
    %cst_10 = arith.constant 1.000000e+00 : f32
    %22 = vector.broadcast %cst_10 : f32 to vector<32x1xf32>
    %23 = vector.extract_strided_slice %21 {offsets = [0, 0], sizes = [32, 63], strides = [1, 1]} : vector<32x64xf32> to vector<32x63xf32>
    %24 = tpu.concatenate %22, %23 in 1 : vector<32x1xf32>, vector<32x63xf32> -> vector<32x64xf32>
    %cst_11 = arith.constant 1.000000e+00 : f32
    %25 = vector.broadcast %cst_11 : f32 to vector<32x1xf32>
    %26 = vector.extract_strided_slice %24 {offsets = [0, 0], sizes = [32, 63], strides = [1, 1]} : vector<32x64xf32> to vector<32x63xf32>
    %27 = tpu.concatenate %25, %26 in 1 : vector<32x1xf32>, vector<32x63xf32> -> vector<32x64xf32>
    %28 = arith.mulf %24, %27 : vector<32x64xf32>
    %cst_12 = arith.constant 1.000000e+00 : f32
    %29 = vector.broadcast %cst_12 : f32 to vector<32x2xf32>
    %30 = vector.extract_strided_slice %28 {offsets = [0, 0], sizes = [32, 62], strides = [1, 1]} : vector<32x64xf32> to vector<32x62xf32>
    %31 = tpu.concatenate %29, %30 in 1 : vector<32x2xf32>, vector<32x62xf32> -> vector<32x64xf32>
    %32 = arith.mulf %28, %31 : vector<32x64xf32>
    %cst_13 = arith.constant 1.000000e+00 : f32
    %33 = vector.broadcast %cst_13 : f32 to vector<32x4xf32>
    %34 = vector.extract_strided_slice %32 {offsets = [0, 0], sizes = [32, 60], strides = [1, 1]} : vector<32x64xf32> to vector<32x60xf32>
    %35 = tpu.concatenate %33, %34 in 1 : vector<32x4xf32>, vector<32x60xf32> -> vector<32x64xf32>
    %36 = arith.mulf %32, %35 : vector<32x64xf32>
    %cst_14 = arith.constant 1.000000e+00 : f32
    %37 = vector.broadcast %cst_14 : f32 to vector<32x8xf32>
    %38 = vector.extract_strided_slice %36 {offsets = [0, 0], sizes = [32, 56], strides = [1, 1]} : vector<32x64xf32> to vector<32x56xf32>
    %39 = tpu.concatenate %37, %38 in 1 : vector<32x8xf32>, vector<32x56xf32> -> vector<32x64xf32>
    %40 = arith.mulf %36, %39 : vector<32x64xf32>
    %cst_15 = arith.constant 1.000000e+00 : f32
    %41 = vector.broadcast %cst_15 : f32 to vector<32x16xf32>
    %42 = vector.extract_strided_slice %40 {offsets = [0, 0], sizes = [32, 48], strides = [1, 1]} : vector<32x64xf32> to vector<32x48xf32>
    %43 = tpu.concatenate %41, %42 in 1 : vector<32x16xf32>, vector<32x48xf32> -> vector<32x64xf32>
    %44 = arith.mulf %40, %43 : vector<32x64xf32>
    %cst_16 = arith.constant 1.000000e+00 : f32
    %45 = vector.broadcast %cst_16 : f32 to vector<32x32xf32>
    %46 = vector.extract_strided_slice %44 {offsets = [0, 0], sizes = [32, 32], strides = [1, 1]} : vector<32x64xf32> to vector<32x32xf32>
    %47 = tpu.concatenate %45, %46 in 1 : vector<32x32xf32>, vector<32x32xf32> -> vector<32x64xf32>
    %48 = arith.mulf %44, %47 : vector<32x64xf32>
    %49 = arith.mulf %17, %48 : vector<32x64xf32>
    %c0_17 = arith.constant 0 : index
    %c0_18 = arith.constant 0 : index
    %50 = vector.load %arg5[%c0_17, %c0_18] : memref<32x64xf32, #tpu.memory_space<vmem>>, vector<32x64xf32>
    tpu.vector_store %arg5[%c0_17, %c0_18], %49 {strides = array<i32>} : memref<32x64xf32, #tpu.memory_space<vmem>>, vector<32x64xf32>,
    %c0_19 = arith.constant 0 : index
    %c0_20 = arith.constant 0 : index
    %c0_21 = arith.constant 0 : index
    %51 = vector.load %arg1[%c0_19, %c0_20, %c0_21] : memref<3x32x64xf32, #tpu.memory_space<vmem>>, vector<1x32x64xf32>
    %52 = vector.shape_cast %51 : vector<1x32x64xf32> to vector<32x64xf32>
    %cst_22 = arith.constant 5.000000e-01 : f32
    %53 = vector.broadcast %cst_22 : f32 to vector<32x64xf32>
    %54 = arith.mulf %53, %52 : vector<32x64xf32>
    %55 = math.tanh %54 : vector<32x64xf32>
    %cst_23 = arith.constant 5.000000e-01 : f32
    %56 = vector.broadcast %cst_23 : f32 to vector<32x64xf32>
    %57 = arith.mulf %56, %55 : vector<32x64xf32>
    %cst_24 = arith.constant 5.000000e-01 : f32
    %58 = vector.broadcast %cst_24 : f32 to vector<32x64xf32>
    %59 = arith.addf %58, %57 : vector<32x64xf32>
    %60 = arith.mulf %49, %59 : vector<32x64xf32>
    %cst_25 = arith.constant dense<0.000000e+00> : vector<32xf32>
    %61 = vector.multi_reduction <add>, %60, %cst_25 [1] : vector<32x64xf32> to vector<32xf32>
    %62 = vector.shape_cast %61 : vector<32xf32> to vector<32x1xf32>
    %c1 = arith.constant 1 : index
    %c0_26 = arith.constant 0 : index
    %c0_27 = arith.constant 0 : index
    %63 = vector.load %arg1[%c1, %c0_26, %c0_27] : memref<3x32x64xf32, #tpu.memory_space<vmem>>, vector<1x32x64xf32>
    %64 = vector.shape_cast %63 : vector<1x32x64xf32> to vector<32x64xf32>
    %cst_28 = arith.constant 5.000000e-01 : f32
    %65 = vector.broadcast %cst_28 : f32 to vector<32x64xf32>
    %66 = arith.mulf %65, %64 : vector<32x64xf32>
    %67 = math.tanh %66 : vector<32x64xf32>
    %cst_29 = arith.constant 5.000000e-01 : f32
    %68 = vector.broadcast %cst_29 : f32 to vector<32x64xf32>
    %69 = arith.mulf %68, %67 : vector<32x64xf32>
    %cst_30 = arith.constant 5.000000e-01 : f32
    %70 = vector.broadcast %cst_30 : f32 to vector<32x64xf32>
    %71 = arith.addf %70, %69 : vector<32x64xf32>
    %72 = arith.mulf %49, %71 : vector<32x64xf32>
    %cst_31 = arith.constant dense<0.000000e+00> : vector<32xf32>
    %73 = vector.multi_reduction <add>, %72, %cst_31 [1] : vector<32x64xf32> to vector<32xf32>
    %74 = vector.shape_cast %73 : vector<32xf32> to vector<32x1xf32>
    %c2 = arith.constant 2 : index
    %c0_32 = arith.constant 0 : index
    %c0_33 = arith.constant 0 : index
    %75 = vector.load %arg1[%c2, %c0_32, %c0_33] : memref<3x32x64xf32, #tpu.memory_space<vmem>>, vector<1x32x64xf32>
    %76 = vector.shape_cast %75 : vector<1x32x64xf32> to vector<32x64xf32>
    %cst_34 = arith.constant 5.000000e-01 : f32
    %77 = vector.broadcast %cst_34 : f32 to vector<32x64xf32>
    %78 = arith.mulf %77, %76 : vector<32x64xf32>
    %79 = math.tanh %78 : vector<32x64xf32>
    %cst_35 = arith.constant 5.000000e-01 : f32
    %80 = vector.broadcast %cst_35 : f32 to vector<32x64xf32>
    %81 = arith.mulf %80, %79 : vector<32x64xf32>
    %cst_36 = arith.constant 5.000000e-01 : f32
    %82 = vector.broadcast %cst_36 : f32 to vector<32x64xf32>
    %83 = arith.addf %82, %81 : vector<32x64xf32>
    %84 = arith.mulf %49, %83 : vector<32x64xf32>
    %cst_37 = arith.constant dense<0.000000e+00> : vector<32xf32>
    %85 = vector.multi_reduction <add>, %84, %cst_37 [1] : vector<32x64xf32> to vector<32xf32>
    %86 = vector.shape_cast %85 : vector<32xf32> to vector<32x1xf32>
    %87 = arith.mulf %49, %1 : vector<32x64xf32>
    %cst_38 = arith.constant dense<0.000000e+00> : vector<32xf32>
    %88 = vector.multi_reduction <add>, %87, %cst_38 [1] : vector<32x64xf32> to vector<32xf32>
    %89 = vector.shape_cast %88 : vector<32xf32> to vector<32x1xf32>
    %cst_39 = arith.constant dense<0.000000e+00> : vector<32xf32>
    %90 = vector.multi_reduction <add>, %49, %cst_39 [1] : vector<32x64xf32> to vector<32xf32>
    %91 = vector.shape_cast %90 : vector<32xf32> to vector<32x1xf32>
    %cst_40 = arith.constant 1.000000e-10 : f32
    %92 = vector.broadcast %cst_40 : f32 to vector<32x1xf32>
    %93 = arith.divf %89, %91 : vector<32x1xf32>
    %94 = arith.maximumf %92, %93 : vector<32x1xf32>
    %cst_41 = arith.constant 1.000000e+00 : f32
    %95 = vector.broadcast %cst_41 : f32 to vector<32x1xf32>
    %96 = arith.divf %95, %94 : vector<32x1xf32>
    %97 = tpu.concatenate %62, %74, %86 in 1 : vector<32x1xf32>, vector<32x1xf32>, vector<32x1xf32> -> vector<32x3xf32>
    %cst_42 = arith.constant 0.000000e+00 : f32
    %98 = vector.broadcast %cst_42 : f32 to vector<32x2xf32>
    %99 = tpu.concatenate %97, %89, %91, %96, %98 in 1 : vector<32x3xf32>, vector<32x1xf32>, vector<32x1xf32>, vector<32x1xf32>, vector<32x2xf32> -> vector<32x8xf32>
    %c0_43 = arith.constant 0 : index
    %c0_44 = arith.constant 0 : index
    %100 = vector.load %arg6[%c0_43, %c0_44] : memref<32x8xf32, #tpu.memory_space<vmem>>, vector<32x8xf32>
    tpu.vector_store %arg6[%c0_43, %c0_44], %99 {strides = array<i32>} : memref<32x8xf32, #tpu.memory_space<vmem>>, vector<32x8xf32>,
    return
  }
  func.func @transform_0(%arg0: i32) -> (i32, i32, i32) {
    %c0_i32 = arith.constant 0 : i32
    %c0_i32_0 = arith.constant 0 : i32
    %c0_i32_1 = arith.constant 0 : i32
    return %c0_i32, %arg0, %c0_i32_0 : i32, i32, i32
  }
  func.func @transform_1(%arg0: i32) -> (i32, i32) {
    %c0_i32 = arith.constant 0 : i32
    %c0_i32_0 = arith.constant 0 : i32
    return %arg0, %c0_i32 : i32, i32
  }
  func.func @transform_2(%arg0: i32) -> (i32, i32) {
    %c0_i32 = arith.constant 0 : i32
    %c0_i32_0 = arith.constant 0 : i32
    return %arg0, %c0_i32 : i32, i32
  }
  func.func @transform_3(%arg0: i32) -> (i32, i32) {
    %c0_i32 = arith.constant 0 : i32
    %c0_i32_0 = arith.constant 0 : i32
    return %arg0, %c0_i32 : i32, i32
  }
  func.func @transform_4(%arg0: i32) -> (i32, i32) {
    %c0_i32 = arith.constant 0 : i32
    %c0_i32_0 = arith.constant 0 : i32
    return %arg0, %c0_i32 : i32, i32
  }
  func.func @transform_5(%arg0: i32) -> (i32, i32) {
    %c0_i32 = arith.constant 0 : i32
    %c0_i32_0 = arith.constant 0 : i32
    return %arg0, %c0_i32 : i32, i32
  }
}

</mosaic_0001>

<llo_original>
// kernel: tpu_custom_call.1
$region0: #{tpu_custom_call.1}
  #allocation0 [shape = 'u32[]', space=smem, size = 0x4, offset = 0x4, fixed_abs, tag = 'smem constant byte address 0x4 - core index']
  #allocation1 [shape = 'u32[72,128]{1,0:T(1,128)}', space=vmem, size = 0x9000, scoped, tag = 'internal scratch']
  %s0 = inlined_call_operand.vmem [shape: f32[3,128,64], index: 0, kind: input, shape index: {}]
  %s1 = inlined_call_operand.vmem [shape: f32[128,64], index: 1, kind: input, shape index: {}]
  %s2 = inlined_call_operand.vmem [shape: f32[128,64], index: 2, kind: input, shape index: {}]
  %s3 = inlined_call_operand.vmem [shape: f32[128,1], index: 3, kind: input, shape index: {}]
  %s4 = inlined_call_operand.vmem [shape: f32[128,64], index: 4, kind: output, shape index: {0}]
  %s5 = inlined_call_operand.vmem [shape: f32[128,8], index: 5, kind: output, shape index: {1}]
  %6 = xla_tuple %s4, %s5
  %s7 = sld [smem:[#allocation0]]
  $region95: #{tpu_custom_call.1} parent=0
    _
  %s9 = ssub.s32 1, %s7
  %s10 = scalar_select 0, %s9, %s7
  $region1: #{tpu_custom_call.1} parent=0
    #allocation2 [shape = 'u8[98304]{0}', space=vmem, size = 0x18000, scoped, tag = 'input window, operand 0']
    loop: start=0, step=1, limit=6
    $region2: #{tpu_custom_call.1} parent=1 // loop_pre_header
      _
    $region3: #{tpu_custom_call.1} parent=1 // loop_header
      %s12 = sphi 0, %s16
      %p13 = scmp.ge.s32.totalorder %s12, 6
      %s22 = sphi 0, %s24
      %s25 = sphi 0, %s22
      %s26 = sphi 0, %s25
      %s42 = sphi 0, %s26
      %s48 = sphi 0, %s50
      %s51 = sphi 0, %s48
      %s52 = sphi 0, %s51
      %s68 = sphi 0, %s52
      %s74 = sphi 0, %s76
      %s77 = sphi 0, %s74
      %s78 = sphi 0, %s77
      %s94 = sphi 0, %s78
      %s100 = sphi 0, %s102
      %s103 = sphi 0, %s100
      %s104 = sphi 0, %s103
      %s120 = sphi 0, %s104
      %s126 = sphi 0, %s128
      %s129 = sphi 0, %s126
      %s130 = sphi 0, %s129
      %s146 = sphi 0, %s130
      %s152 = sphi 0, %s154
      %s155 = sphi 0, %s152
      %s156 = sphi 0, %s155
      %s172 = sphi 0, %s156
    $region4: #{tpu_custom_call.1} parent=1 // loop_header_branch
      %15 = sbr.rel (%p13) target = $region8
    $region5: #{tpu_custom_call.1} parent=1 // loop_body
      %s17 = ssub.s32 %s12, 1
      %s18 = ssub.s32 %s12, 2
      %s19 = sadd.s32 %s12, 1
      %s20 = ssub.s32 %s12, %s19
      %p21 = scmp.eq.s32.totalorder %s20, 0
      %s23 = sadd.s32 %s22, 1
      %s24 = scalar_select %p21, %s22, %s23
      %p27 = pneg %p21
      %p28 = scmp.eq.s32.totalorder %s12, 3
      %p29 = por %p27, %p28
      %p30 = scmp.ne.s32.totalorder %s22, %s25
      %p31 = scmp.eq.s32.totalorder %s12, 0
      %p32 = por %p30, %p31
      %p33 = scmp.ne.s32.totalorder %s22, %s25
      %p34 = scmp.eq.s32.totalorder %s17, 3
      %p35 = por %p33, %p34
      %p36 = scmp.ne.s32.totalorder %s25, %s26
      %p37 = scmp.eq.s32.totalorder %s17, 0
      %p38 = por %p36, %p37
      %p39 = scmp.ne.s32.totalorder %s25, %s26
      %p40 = scmp.eq.s32.totalorder %s18, 3
      %p41 = por %p39, %p40
      %p43 = scmp.ne.s32.totalorder %s26, %s42
      %p44 = scmp.eq.s32.totalorder %s18, 0
      %p45 = por %p43, %p44
      %s46 = ssub.s32 %s12, %s19
      %p47 = scmp.eq.s32.totalorder %s46, 0
      %s49 = sadd.s32 %s48, 1
      %s50 = scalar_select %p47, %s48, %s49
      %p53 = pneg %p47
      %p54 = scmp.eq.s32.totalorder %s12, 3
      %p55 = por %p53, %p54
      %p56 = scmp.ne.s32.totalorder %s48, %s51
      %p57 = scmp.eq.s32.totalorder %s12, 0
      %p58 = por %p56, %p57
      %p59 = scmp.ne.s32.totalorder %s48, %s51
      %p60 = scmp.eq.s32.totalorder %s17, 3
      %p61 = por %p59, %p60
      %p62 = scmp.ne.s32.totalorder %s51, %s52
      %p63 = scmp.eq.s32.totalorder %s17, 0
      %p64 = por %p62, %p63
      %p65 = scmp.ne.s32.totalorder %s51, %s52
      %p66 = scmp.eq.s32.totalorder %s18, 3
      %p67 = por %p65, %p66
      %p69 = scmp.ne.s32.totalorder %s52, %s68
      %p70 = scmp.eq.s32.totalorder %s18, 0
      %p71 = por %p69, %p70
      %s72 = ssub.s32 %s12, %s19
      %p73 = scmp.eq.s32.totalorder %s72, 0
      %s75 = sadd.s32 %s74, 1
      %s76 = scalar_select %p73, %s74, %s75
      %p79 = pneg %p73
      %p80 = scmp.eq.s32.totalorder %s12, 3
      %p81 = por %p79, %p80
      %p82 = scmp.ne.s32.totalorder %s74, %s77
      %p83 = scmp.eq.s32.totalorder %s12, 0
      %p84 = por %p82, %p83
      %p85 = scmp.ne.s32.totalorder %s74, %s77
      %p86 = scmp.eq.s32.totalorder %s17, 3
      %p87 = por %p85, %p86
      %p88 = scmp.ne.s32.totalorder %s77, %s78
      %p89 = scmp.eq.s32.totalorder %s17, 0
      %p90 = por %p88, %p89
      %p91 = scmp.ne.s32.totalorder %s77, %s78
      %p92 = scmp.eq.s32.totalorder %s18, 3
      %p93 = por %p91, %p92
      %p95 = scmp.ne.s32.totalorder %s78, %s94
      %p96 = scmp.eq.s32.totalorder %s18, 0
      %p97 = por %p95, %p96
      %s98 = ssub.s32 %s12, %s19
      %p99 = scmp.eq.s32.totalorder %s98, 0
      %s101 = sadd.s32 %s100, 1
      %s102 = scalar_select %p99, %s100, %s101
      %p105 = pneg %p99
      %p106 = scmp.eq.s32.totalorder %s12, 3
      %p107 = por %p105, %p106
      %p108 = scmp.ne.s32.totalorder %s100, %s103
      %p109 = scmp.eq.s32.totalorder %s12, 0
      %p110 = por %p108, %p109
      %p111 = scmp.ne.s32.totalorder %s100, %s103
      %p112 = scmp.eq.s32.totalorder %s17, 3
      %p113 = por %p111, %p112
      %p114 = scmp.ne.s32.totalorder %s103, %s104
      %p115 = scmp.eq.s32.totalorder %s17, 0
      %p116 = por %p114, %p115
      %p117 = scmp.ne.s32.totalorder %s103, %s104
      %p118 = scmp.eq.s32.totalorder %s18, 3
      %p119 = por %p117, %p118
      %p121 = scmp.ne.s32.totalorder %s104, %s120
      %p122 = scmp.eq.s32.totalorder %s18, 0
      %p123 = por %p121, %p122
      %s124 = ssub.s32 %s12, %s19
      %p125 = scmp.eq.s32.totalorder %s124, 0
      %s127 = sadd.s32 %s126, 1
      %s128 = scalar_select %p125, %s126, %s127
      %p131 = pneg %p125
      %p132 = scmp.eq.s32.totalorder %s12, 3
      %p133 = por %p131, %p132
      %p134 = scmp.ne.s32.totalorder %s126, %s129
      %p135 = scmp.eq.s32.totalorder %s12, 0
      %p136 = por %p134, %p135
      %p137 = scmp.ne.s32.totalorder %s126, %s129
      %p138 = scmp.eq.s32.totalorder %s17, 3
      %p139 = por %p137, %p138
      %p140 = scmp.ne.s32.totalorder %s129, %s130
      %p141 = scmp.eq.s32.totalorder %s17, 0
      %p142 = por %p140, %p141
      %p143 = scmp.ne.s32.totalorder %s129, %s130
      %p144 = scmp.eq.s32.totalorder %s18, 3
      %p145 = por %p143, %p144
      %p147 = scmp.ne.s32.totalorder %s130, %s146
      %p148 = scmp.eq.s32.totalorder %s18, 0
      %p149 = por %p147, %p148
      %s150 = ssub.s32 %s12, %s19
      %p151 = scmp.eq.s32.totalorder %s150, 0
      %s153 = sadd.s32 %s152, 1
      %s154 = scalar_select %p151, %s152, %s153
      %p157 = pneg %p151
      %p158 = scmp.eq.s32.totalorder %s12, 3
      %p159 = por %p157, %p158
      %p160 = scmp.ne.s32.totalorder %s152, %s155
      %p161 = scmp.eq.s32.totalorder %s12, 0
      %p162 = por %p160, %p161
      %p163 = scmp.ne.s32.totalorder %s152, %s155
      %p164 = scmp.eq.s32.totalorder %s17, 3
      %p165 = por %p163, %p164
      %p166 = scmp.ne.s32.totalorder %s155, %s156
      %p167 = scmp.eq.s32.totalorder %s17, 0
      %p168 = por %p166, %p167
      %p169 = scmp.ne.s32.totalorder %s155, %s156
      %p170 = scmp.eq.s32.totalorder %s18, 3
      %p171 = por %p169, %p170
      %p173 = scmp.ne.s32.totalorder %s156, %s172
      %p174 = scmp.eq.s32.totalorder %s18, 0
      %p175 = por %p173, %p174
      %p176 = scmp.le.s32.totalorder 1, %s12
      %p177 = scmp.lt.s32.totalorder %s12, 5
      %p178 = pnand %p176, %p177
      %p179 = pneg %p178
      // Predicated region
      $region9: #{tpu_custom_call.1} parent=5 // pred_check
        _
      $region10: #{tpu_custom_call.1} parent=5 // pred_check_branch
        %181 = sbr.rel (%p178) target = $region12
      $region11: #{tpu_custom_call.1} parent=5 // pred_region
        %s182 = ssub.s32 %s12, 1
      $region12: #{tpu_custom_call.1} parent=5 // pred_fallthru
        _
      %p183 = scmp.lt.s32.totalorder %s12, 4
      // Predicated region
      $region13: #{tpu_custom_call.1} parent=5 // pred_check
        %p184 = pneg %p183
      $region14: #{tpu_custom_call.1} parent=5 // pred_check_branch
        %186 = sbr.rel (%p184) target = $region16
      $region15: #{tpu_custom_call.1} parent=5 // pred_region
        // Predicated region
        $region17: #{tpu_custom_call.1} parent=15 // pred_check
          %p187 = pneg %p32
        $region18: #{tpu_custom_call.1} parent=15 // pred_check_branch
          %189 = sbr.rel (%p187) target = $region20
        $region19: #{tpu_custom_call.1} parent=15 // pred_region
          %s190 = sand.u32 %s22, 1
          %s191 = sand.u32 %s22, 1
          %s192 = smul.addr %s191, 96
          %s193 = scalar_lea.vmem [#allocation2], %s192
          %s194 = smul.u32 4, %s12
          %s195 = smul.addr %s194, 8
          %s196 = scalar_lea.vmem %s0, %s195
          // Predicated region
          $region21: #{tpu_custom_call.1} parent=19 // pred_check
            _
          $region22: #{tpu_custom_call.1} parent=19 // pred_check_branch
            %198 = sbr.rel (0) target = $region24
          $region23: #{tpu_custom_call.1} parent=19 // pred_region
            // Predicated region
            $region25: #{tpu_custom_call.1} parent=23 // pred_check
              _
            $region26: #{tpu_custom_call.1} parent=23 // pred_check_branch
              %200 = sbr.rel (0) target = $region28
            $region27: #{tpu_custom_call.1} parent=23 // pred_region
              // Predicated region
              $region40: #{tpu_custom_call.1} parent=27 // pred_check
                _
              $region41: #{tpu_custom_call.1} parent=27 // pred_check_branch
                %238 = sbr.rel (0) target = $region43
              $region42: #{tpu_custom_call.1} parent=27 // pred_region
                loop: start=0, step=1, limit=1
                $region44: #{tpu_custom_call.1} parent=42 // loop_pre_header
                  _
                $region45: #{tpu_custom_call.1} parent=42 // loop_header
                  %s240 = sphi 0, %s244
                  %p241 = scmp.ge.s32.totalorder %s240, 1
                  %s245 = sphi %s196, %s196
                  %s246 = sphi %s193, %s193
                $region46: #{tpu_custom_call.1} parent=42 // loop_header_branch
                  %243 = sbr.rel (%p241) target = $region50
                $region47: #{tpu_custom_call.1} parent=42 // loop_body
                  %v247 = vld [vmem:[%s245] sm:$0xff]
                  %248 = vst [vmem:[%s246] sm:$0xff] %v247
                  %v249 = vld [vmem:[%s245 + $0x8] sm:$0xff]
                  %250 = vst [vmem:[%s246 + $0x8] sm:$0xff] %v249
                  %v251 = vld [vmem:[%s245 + $0x10] sm:$0xff]
                  %252 = vst [vmem:[%s246 + $0x10] sm:$0xff] %v251
                  %v253 = vld [vmem:[%s245 + $0x18] sm:$0xff]
                  %254 = vst [vmem:[%s246 + $0x18] sm:$0xff] %v253
                  %v255 = vld [vmem:[%s245 + $0x80] sm:$0xff]
                  %256 = vst [vmem:[%s246 + $0x20] sm:$0xff] %v255
                  %v257 = vld [vmem:[%s245 + $0x88] sm:$0xff]
                  %258 = vst [vmem:[%s246 + $0x28] sm:$0xff] %v257
                  %v259 = vld [vmem:[%s245 + $0x90] sm:$0xff]
                  %260 = vst [vmem:[%s246 + $0x30] sm:$0xff] %v259
                  %v261 = vld [vmem:[%s245 + $0x98] sm:$0xff]
                  %262 = vst [vmem:[%s246 + $0x38] sm:$0xff] %v261
                  %v263 = vld [vmem:[%s245 + $0x100] sm:$0xff]
                  %264 = vst [vmem:[%s246 + $0x40] sm:$0xff] %v263
                  %v265 = vld [vmem:[%s245 + $0x108] sm:$0xff]
                  %266 = vst [vmem:[%s246 + $0x48] sm:$0xff] %v265
                  %v267 = vld [vmem:[%s245 + $0x110] sm:$0xff]
                  %268 = vst [vmem:[%s246 + $0x50] sm:$0xff] %v267
                  %v269 = vld [vmem:[%s245 + $0x118] sm:$0xff]
                  %270 = vst [vmem:[%s246 + $0x58] sm:$0xff] %v269
                $region48: #{tpu_custom_call.1} parent=42 // loop_footer
                  %s244 = sadd.s32 1, %s240
                $region49: #{tpu_custom_call.1} parent=42 // loop_footer_branch
                  %239 = sbr.rel target = $region45
                $region50: #{tpu_custom_call.1} parent=42 // loop_exit
                  _
              $region43: #{tpu_custom_call.1} parent=27 // pred_fallthru
                _
              // Predicated region
              $region51: #{tpu_custom_call.1} parent=27 // pred_check
                _
              $region52: #{tpu_custom_call.1} parent=27 // pred_check_branch
                %272 = sbr.rel target = $region54
              $region53: #{tpu_custom_call.1} parent=27 // pred_region
                _
              $region54: #{tpu_custom_call.1} parent=27 // pred_fallthru
                _
            $region28: #{tpu_custom_call.1} parent=23 // pred_fallthru
              _
            // Predicated region
            $region29: #{tpu_custom_call.1} parent=23 // pred_check
              _
            $region30: #{tpu_custom_call.1} parent=23 // pred_check_branch
              %202 = sbr.rel target = $region32
            $region31: #{tpu_custom_call.1} parent=23 // pred_region
              %s204 = ssub.s32 256, 1
              loop: start=0, step=1, limit=1
              $region33: #{tpu_custom_call.1} parent=31 // loop_pre_header
                _
              $region34: #{tpu_custom_call.1} parent=31 // loop_header
                %s206 = sphi 0, %s210
                %p207 = scmp.ge.s32.totalorder %s206, 1
                %s211 = sphi %s196, %s196
                %s212 = sphi %s193, %s193
              $region35: #{tpu_custom_call.1} parent=31 // loop_header_branch
                %209 = sbr.rel (%p207) target = $region39
              $region36: #{tpu_custom_call.1} parent=31 // loop_body
                %v213 = vld [vmem:[%s211] sm:%s204]
                %214 = vst [vmem:[%s212] sm:%s204] %v213
                %v215 = vld [vmem:[%s211 + $0x8] sm:%s204]
                %216 = vst [vmem:[%s212 + $0x8] sm:%s204] %v215
                %v217 = vld [vmem:[%s211 + $0x10] sm:%s204]
                %218 = vst [vmem:[%s212 + $0x10] sm:%s204] %v217
                %v219 = vld [vmem:[%s211 + $0x18] sm:%s204]
                %220 = vst [vmem:[%s212 + $0x18] sm:%s204] %v219
                %v221 = vld [vmem:[%s211 + $0x80] sm:%s204]
                %222 = vst [vmem:[%s212 + $0x20] sm:%s204] %v221
                %v223 = vld [vmem:[%s211 + $0x88] sm:%s204]
                %224 = vst [vmem:[%s212 + $0x28] sm:%s204] %v223
                %v225 = vld [vmem:[%s211 + $0x90] sm:%s204]
                %226 = vst [vmem:[%s212 + $0x30] sm:%s204] %v225
                %v227 = vld [vmem:[%s211 + $0x98] sm:%s204]
                %228 = vst [vmem:[%s212 + $0x38] sm:%s204] %v227
                %v229 = vld [vmem:[%s211 + $0x100] sm:%s204]
                %230 = vst [vmem:[%s212 + $0x40] sm:%s204] %v229
                %v231 = vld [vmem:[%s211 + $0x108] sm:%s204]
                %232 = vst [vmem:[%s212 + $0x48] sm:%s204] %v231
                %v233 = vld [vmem:[%s211 + $0x110] sm:%s204]
                %234 = vst [vmem:[%s212 + $0x50] sm:%s204] %v233
                %v235 = vld [vmem:[%s211 + $0x118] sm:%s204]
                %236 = vst [vmem:[%s212 + $0x58] sm:%s204] %v235
              $region37: #{tpu_custom_call.1} parent=31 // loop_footer
                %s210 = sadd.s32 1, %s206
              $region38: #{tpu_custom_call.1} parent=31 // loop_footer_branch
                %205 = sbr.rel target = $region34
              $region39: #{tpu_custom_call.1} parent=31 // loop_exit
                _
            $region32: #{tpu_custom_call.1} parent=23 // pred_fallthru
              _
          $region24: #{tpu_custom_call.1} parent=19 // pred_fallthru
            _
          %273 = vnop
        $region20: #{tpu_custom_call.1} parent=15 // pred_fallthru
          _
        // Predicated region
        $region55: #{tpu_custom_call.1} parent=15 // pred_check
          %p274 = pneg %p58
        $region56: #{tpu_custom_call.1} parent=15 // pred_check_branch
          %276 = sbr.rel (%p274) target = $region58
        $region57: #{tpu_custom_call.1} parent=15 // pred_region
          %s277 = smul.u32 4, %s12
          %p278 = scmp.lt.s32.totalorder %s277, 15
          %s279 = scalar_select %p278, %s277, 15
          %s280 = smul.addr %s279, 8
          %s281 = scalar_lea.vmem %s1, %s280
          %s282 = smul.u32 4, %s12
        $region58: #{tpu_custom_call.1} parent=15 // pred_fallthru
          _
        // Predicated region
        $region59: #{tpu_custom_call.1} parent=15 // pred_check
          %p283 = pneg %p84
        $region60: #{tpu_custom_call.1} parent=15 // pred_check_branch
          %285 = sbr.rel (%p283) target = $region62
        $region61: #{tpu_custom_call.1} parent=15 // pred_region
          %s286 = smul.u32 4, %s12
          %p287 = scmp.lt.s32.totalorder %s286, 15
          %s288 = scalar_select %p287, %s286, 15
          %s289 = smul.addr %s288, 8
          %s290 = scalar_lea.vmem %s2, %s289
          %s291 = smul.u32 4, %s12
        $region62: #{tpu_custom_call.1} parent=15 // pred_fallthru
          _
        // Predicated region
        $region63: #{tpu_custom_call.1} parent=15 // pred_check
          %p292 = pneg %p110
        $region64: #{tpu_custom_call.1} parent=15 // pred_check_branch
          %294 = sbr.rel (%p292) target = $region66
        $region65: #{tpu_custom_call.1} parent=15 // pred_region
          %s295 = smul.u32 4, %s12
          %p296 = scmp.lt.s32.totalorder %s295, 15
          %s297 = scalar_select %p296, %s295, 15
          %s298 = smul.addr %s297, 8
          %s299 = scalar_lea.vmem %s3, %s298
          %s300 = smul.u32 4, %s12
        $region66: #{tpu_custom_call.1} parent=15 // pred_fallthru
          _
      $region16: #{tpu_custom_call.1} parent=5 // pred_fallthru
        _
      %p301 = scmp.le.s32.totalorder 1, %s12
      %p302 = scmp.lt.s32.totalorder %s12, 5
      %p303 = pnand %p301, %p302
      %p304 = pneg %p303
      // Predicated region
      $region67: #{tpu_custom_call.1} parent=5 // pred_check
        _
      $region68: #{tpu_custom_call.1} parent=5 // pred_check_branch
        %306 = sbr.rel (%p303) target = $region70
      $region69: #{tpu_custom_call.1} parent=5 // pred_region
        %s307 = ssub.s32 %s12, 1
        %s308 = sand.u32 %s25, 1
        %s309 = sand.u32 %s25, 1
        %s310 = smul.addr %s309, 96
        %s311 = scalar_lea.vmem [#allocation2], %s310
        // Predicated region
        $region71: #{tpu_custom_call.1} parent=69 // pred_check
          %p312 = pneg %p38
        $region72: #{tpu_custom_call.1} parent=69 // pred_check_branch
          %314 = sbr.rel (%p312) target = $region74
        $region73: #{tpu_custom_call.1} parent=69 // pred_region
          _
        $region74: #{tpu_custom_call.1} parent=69 // pred_fallthru
          _
        %s315 = sand.u32 %s25, 1
        %s316 = sand.u32 %s25, 1
        %s317 = smul.addr %s316, 96
        %s318 = scalar_lea.vmem [#allocation2], %s317
        %p319 = pneg %p38
        %p320 = pneg %p35
        %s321 = smul.u32 4, %s17
        %p322 = scmp.lt.s32.totalorder %s321, 15
        %s323 = scalar_select %p322, %s321, 15
        %s324 = smul.addr %s323, 8
        %s325 = scalar_lea.vmem %s1, %s324
        %p326 = pneg %p64
        %p327 = pneg %p61
        %s328 = smul.u32 4, %s17
        %p329 = scmp.lt.s32.totalorder %s328, 15
        %s330 = scalar_select %p329, %s328, 15
        %s331 = smul.addr %s330, 8
        %s332 = scalar_lea.vmem %s2, %s331
        %p333 = pneg %p90
        %p334 = pneg %p87
        %s335 = smul.u32 4, %s17
        %p336 = scmp.lt.s32.totalorder %s335, 15
        %s337 = scalar_select %p336, %s335, 15
        %s338 = smul.addr %s337, 8
        %s339 = scalar_lea.vmem %s3, %s338
        %p340 = pneg %p116
        %p341 = pneg %p113
        %p342 = pneg %p142
        %p343 = pneg %p139
        %s344 = smul.u32 4, %s17
        %p345 = scmp.lt.s32.totalorder %s344, 15
        %s346 = scalar_select %p345, %s344, 15
        %s347 = smul.addr %s346, 8
        %s348 = scalar_lea.vmem %s4, %s347
        %p349 = pneg %p168
        %p350 = pneg %p165
        %s351 = smul.u32 4, %s17
        %p352 = scmp.lt.s32.totalorder %s351, 15
        %s353 = scalar_select %p352, %s351, 15
        %s354 = smul.addr %s353, 8
        %s355 = scalar_lea.vmem %s5, %s354
        %s356 = smul.u32 4, %s17
        %s357 = smul.u32 4, %s17
        %p358 = scmp.lt.s32.totalorder %s357, 15
        %s359 = scalar_select %p358, %s357, 15
        %s360 = smul.addr %s359, 8
        %s361 = scalar_lea.vmem %s1, %s360
        %s362 = smul.u32 4, %s17
        %s363 = smul.u32 4, %s17
        %p364 = scmp.lt.s32.totalorder %s363, 15
        %s365 = scalar_select %p364, %s363, 15
        %s366 = smul.addr %s365, 8
        %s367 = scalar_lea.vmem %s2, %s366
        %s368 = smul.u32 4, %s17
        %s369 = smul.u32 4, %s17
        %p370 = scmp.lt.s32.totalorder %s369, 15
        %s371 = scalar_select %p370, %s369, 15
        %s372 = smul.addr %s371, 8
        %s373 = scalar_lea.vmem %s3, %s372
        %s374 = smul.u32 4, %s17
        %s375 = smul.u32 4, %s17
        %p376 = scmp.lt.s32.totalorder %s375, 15
        %s377 = scalar_select %p376, %s375, 15
        %s378 = smul.addr %s377, 8
        %s379 = scalar_lea.vmem %s4, %s378
        %s380 = smul.u32 4, %s17
        %s381 = smul.u32 4, %s17
        %p382 = scmp.lt.s32.totalorder %s381, 15
        %s383 = scalar_select %p382, %s381, 15
        %s384 = smul.addr %s383, 8
        %s385 = scalar_lea.vmem %s5, %s384
        %s386 = smul.u32 4, %s17
        %v387 = vld [vmem:[%s361] sm:$0xff]
        %v388 = vld [vmem:[%s361 + $0x8] sm:$0xff]
        %v389 = vld [vmem:[%s361 + $0x10] sm:$0xff]
        %v390 = vld [vmem:[%s361 + $0x18] sm:$0xff]
        %v391 = vld [vmem:[%s367] sm:$0xff]
        %v392 = vld [vmem:[%s367 + $0x8] sm:$0xff]
        %v393 = vld [vmem:[%s367 + $0x10] sm:$0xff]
        %v394 = vld [vmem:[%s367 + $0x18] sm:$0xff]
        %v395 = vld [vmem:[%s373] sm:$0xff]
        %v396 = vld [vmem:[%s373 + $0x8] sm:$0xff]
        %v397 = vld [vmem:[%s373 + $0x10] sm:$0xff]
        %v398 = vld [vmem:[%s373 + $0x18] sm:$0xff]
        %403 = vrot.lane.b32.xlu0 %v391, 1
        %v404 = vpop.permute.xlu0 %403
        %405 = vrot.lane.b32.xlu0 %v392, 1
        %v406 = vpop.permute.xlu0 %405
        %407 = vrot.lane.b32.xlu0 %v393, 1
        %v408 = vpop.permute.xlu0 %407
        %409 = vrot.lane.b32.xlu0 %v394, 1
        %v410 = vpop.permute.xlu0 %409
        %v415 = vsub.f32 %v391, %v404
        %v416 = vsub.f32 %v392, %v406
        %v417 = vsub.f32 %v393, %v408
        %v418 = vsub.f32 %v394, %v410
        %423 = vrot.lane.b32.xlu0 %v415, 127
        %v424 = vpop.permute.xlu0 %423
        %425 = vrot.lane.b32.xlu0 %v416, 127
        %v426 = vpop.permute.xlu0 %425
        %427 = vrot.lane.b32.xlu0 %v417, 127
        %v428 = vpop.permute.xlu0 %427
        %429 = vrot.lane.b32.xlu0 %v418, 127
        %v430 = vpop.permute.xlu0 %429
        %vm435 = vcmask 515072
        %v436 = vsel %vm435, %v424, 1e+10
        %v437 = vsel %vm435, %v426, 1e+10
        %v438 = vsel %vm435, %v428, 1e+10
        %v439 = vsel %vm435, %v430, 1e+10
        %441 = vset.pattern.permute.xlu0 0
        %442 = vperm.xlu0 %441, %v395
        %v443 = vpop.permute.xlu0 %442
        %446 = vset.pattern.permute.xlu0 0
        %447 = vperm.xlu0 %446, %v396
        %v448 = vpop.permute.xlu0 %447
        %451 = vset.pattern.permute.xlu0 0
        %452 = vperm.xlu0 %451, %v397
        %v453 = vpop.permute.xlu0 %452
        %456 = vset.pattern.permute.xlu0 0
        %457 = vperm.xlu0 %456, %v398
        %v458 = vpop.permute.xlu0 %457
        %v460 = vmul.f32 %v436, %v443
        %v461 = vmul.f32 %v437, %v448
        %v462 = vmul.f32 %v438, %v453
        %v463 = vmul.f32 %v439, %v458
        %v464 = vmax.f32 %v387, 0.0
        %v465 = vmax.f32 %v388, 0.0
        %v466 = vmax.f32 %v389, 0.0
        %v467 = vmax.f32 %v390, 0.0
        %v468 = vsub.f32 0.0, %v464
        %v469 = vsub.f32 0.0, %v465
        %v470 = vsub.f32 0.0, %v466
        %v471 = vsub.f32 0.0, %v467
        %v472 = vmul.f32 %v468, %v460
        %v473 = vmul.f32 %v469, %v461
        %v474 = vmul.f32 %v470, %v462
        %v475 = vmul.f32 %v471, %v463
        %v476 = vmul.f32 %v472, 1.442695
        %v477 = vpow.pop %v476
        %v478 = vmul.f32 %v473, 1.442695
        %v479 = vpow.pop %v478
        %v480 = vmul.f32 %v474, 1.442695
        %v481 = vpow.pop %v480
        %v482 = vmul.f32 %v475, 1.442695
        %v483 = vpow.pop %v482
        %v484 = vsub.f32 1.0, %v477
        %v485 = vsub.f32 1.0, %v479
        %v486 = vsub.f32 1.0, %v481
        %v487 = vsub.f32 1.0, %v483
        %v488 = vsub.f32 1.0, %v484
        %v489 = vsub.f32 1.0, %v485
        %v490 = vsub.f32 1.0, %v486
        %v491 = vsub.f32 1.0, %v487
        %v492 = vadd.f32 %v488, 1e-10
        %v493 = vadd.f32 %v489, 1e-10
        %v494 = vadd.f32 %v490, 1e-10
        %v495 = vadd.f32 %v491, 1e-10
        %500 = vrot.lane.b32.xlu0 %v492, 1
        %v501 = vpop.permute.xlu0 %500
        %502 = vrot.lane.b32.xlu0 %v493, 1
        %v503 = vpop.permute.xlu0 %502
        %504 = vrot.lane.b32.xlu0 %v494, 1
        %v505 = vpop.permute.xlu0 %504
        %506 = vrot.lane.b32.xlu0 %v495, 1
        %v507 = vpop.permute.xlu0 %506
        %vm512 = vcmask 7168
        %v513 = vsel %vm512, 1.0, %v501
        %v514 = vsel %vm512, 1.0, %v503
        %v515 = vsel %vm512, 1.0, %v505
        %v516 = vsel %vm512, 1.0, %v507
        %521 = vrot.lane.b32.xlu0 %v513, 1
        %v522 = vpop.permute.xlu0 %521
        %523 = vrot.lane.b32.xlu0 %v514, 1
        %v524 = vpop.permute.xlu0 %523
        %525 = vrot.lane.b32.xlu0 %v515, 1
        %v526 = vpop.permute.xlu0 %525
        %527 = vrot.lane.b32.xlu0 %v516, 1
        %v528 = vpop.permute.xlu0 %527
        %v533 = vsel %vm512, 1.0, %v522
        %v534 = vsel %vm512, 1.0, %v524
        %v535 = vsel %vm512, 1.0, %v526
        %v536 = vsel %vm512, 1.0, %v528
        %v537 = vmul.f32 %v513, %v533
        %v538 = vmul.f32 %v514, %v534
        %v539 = vmul.f32 %v515, %v535
        %v540 = vmul.f32 %v516, %v536
        %545 = vrot.lane.b32.xlu0 %v537, 2
        %v546 = vpop.permute.xlu0 %545
        %547 = vrot.lane.b32.xlu0 %v538, 2
        %v548 = vpop.permute.xlu0 %547
        %549 = vrot.lane.b32.xlu0 %v539, 2
        %v550 = vpop.permute.xlu0 %549
        %551 = vrot.lane.b32.xlu0 %v540, 2
        %v552 = vpop.permute.xlu0 %551
        %vm557 = vcmask 15360
        %v558 = vsel %vm557, 1.0, %v546
        %v559 = vsel %vm557, 1.0, %v548
        %v560 = vsel %vm557, 1.0, %v550
        %v561 = vsel %vm557, 1.0, %v552
        %v562 = vmul.f32 %v537, %v558
        %v563 = vmul.f32 %v538, %v559
        %v564 = vmul.f32 %v539, %v560
        %v565 = vmul.f32 %v540, %v561
        %570 = vrot.lane.b32.xlu0 %v562, 4
        %v571 = vpop.permute.xlu0 %570
        %572 = vrot.lane.b32.xlu0 %v563, 4
        %v573 = vpop.permute.xlu0 %572
        %574 = vrot.lane.b32.xlu0 %v564, 4
        %v575 = vpop.permute.xlu0 %574
        %576 = vrot.lane.b32.xlu0 %v565, 4
        %v577 = vpop.permute.xlu0 %576
        %vm582 = vcmask 31744
        %v583 = vsel %vm582, 1.0, %v571
        %v584 = vsel %vm582, 1.0, %v573
        %v585 = vsel %vm582, 1.0, %v575
        %v586 = vsel %vm582, 1.0, %v577
        %v587 = vmul.f32 %v562, %v583
        %v588 = vmul.f32 %v563, %v584
        %v589 = vmul.f32 %v564, %v585
        %v590 = vmul.f32 %v565, %v586
        %595 = vrot.lane.b32.xlu0 %v587, 8
        %v596 = vpop.permute.xlu0 %595
        %597 = vrot.lane.b32.xlu0 %v588, 8
        %v598 = vpop.permute.xlu0 %597
        %599 = vrot.lane.b32.xlu0 %v589, 8
        %v600 = vpop.permute.xlu0 %599
        %601 = vrot.lane.b32.xlu0 %v590, 8
        %v602 = vpop.permute.xlu0 %601
        %vm607 = vcmask 64512
        %v608 = vsel %vm607, 1.0, %v596
        %v609 = vsel %vm607, 1.0, %v598
        %v610 = vsel %vm607, 1.0, %v600
        %v611 = vsel %vm607, 1.0, %v602
        %v612 = vmul.f32 %v587, %v608
        %v613 = vmul.f32 %v588, %v609
        %v614 = vmul.f32 %v589, %v610
        %v615 = vmul.f32 %v590, %v611
        %620 = vrot.lane.b32.xlu0 %v612, 16
        %v621 = vpop.permute.xlu0 %620
        %622 = vrot.lane.b32.xlu0 %v613, 16
        %v623 = vpop.permute.xlu0 %622
        %624 = vrot.lane.b32.xlu0 %v614, 16
        %v625 = vpop.permute.xlu0 %624
        %626 = vrot.lane.b32.xlu0 %v615, 16
        %v627 = vpop.permute.xlu0 %626
        %vm632 = vcmask 130048
        %v633 = vsel %vm632, 1.0, %v621
        %v634 = vsel %vm632, 1.0, %v623
        %v635 = vsel %vm632, 1.0, %v625
        %v636 = vsel %vm632, 1.0, %v627
        %v637 = vmul.f32 %v612, %v633
        %v638 = vmul.f32 %v613, %v634
        %v639 = vmul.f32 %v614, %v635
        %v640 = vmul.f32 %v615, %v636
        %645 = vrot.lane.b32.xlu0 %v637, 32
        %v646 = vpop.permute.xlu0 %645
        %647 = vrot.lane.b32.xlu0 %v638, 32
        %v648 = vpop.permute.xlu0 %647
        %649 = vrot.lane.b32.xlu0 %v639, 32
        %v650 = vpop.permute.xlu0 %649
        %651 = vrot.lane.b32.xlu0 %v640, 32
        %v652 = vpop.permute.xlu0 %651
        %vm657 = vcmask 261120
        %v658 = vsel %vm657, 1.0, %v646
        %v659 = vsel %vm657, 1.0, %v648
        %v660 = vsel %vm657, 1.0, %v650
        %v661 = vsel %vm657, 1.0, %v652
        %v662 = vmul.f32 %v637, %v658
        %v663 = vmul.f32 %v638, %v659
        %v664 = vmul.f32 %v639, %v660
        %v665 = vmul.f32 %v640, %v661
        %v666 = vmul.f32 %v484, %v662
        %v667 = vmul.f32 %v485, %v663
        %v668 = vmul.f32 %v486, %v664
        %v669 = vmul.f32 %v487, %v665
        %vm670 = vcmask 523264
        %671 = vst.msk [vmem:[%s379] sm:$0xff] %vm670, %v666
        %672 = vst.msk [vmem:[%s379 + $0x8] sm:$0xff] %vm670, %v667
        %673 = vst.msk [vmem:[%s379 + $0x10] sm:$0xff] %vm670, %v668
        %674 = vst.msk [vmem:[%s379 + $0x18] sm:$0xff] %vm670, %v669
        %v675 = vld [vmem:[%s311] sm:$0xff]
        %v676 = vld [vmem:[%s311 + $0x8] sm:$0xff]
        %v677 = vld [vmem:[%s311 + $0x10] sm:$0xff]
        %v678 = vld [vmem:[%s311 + $0x18] sm:$0xff]
        %v679 = vmul.f32 %v675, 0.5
        %v680 = vmul.f32 %v676, 0.5
        %v681 = vmul.f32 %v677, 0.5
        %v682 = vmul.f32 %v678, 0.5
        %v683 = vtanh.pop %v679
        %v684 = vtanh.pop %v680
        %v685 = vtanh.pop %v681
        %v686 = vtanh.pop %v682
        %v687 = vmul.f32 %v683, 0.5
        %v688 = vmul.f32 %v684, 0.5
        %v689 = vmul.f32 %v685, 0.5
        %v690 = vmul.f32 %v686, 0.5
        %v691 = vadd.f32 %v687, 0.5
        %v692 = vadd.f32 %v688, 0.5
        %v693 = vadd.f32 %v689, 0.5
        %v694 = vadd.f32 %v690, 0.5
        %v695 = vmul.f32 %v666, %v691
        %v696 = vmul.f32 %v667, %v692
        %v697 = vmul.f32 %v668, %v693
        %v698 = vmul.f32 %v669, %v694
        %v699 = vsel %vm670, %v695, 0.0
        %700 = vadd.xlane.f32.xlu0 %v699
        %v701 = vpop.xlane.xlu0 %700
        %v702 = vsel %vm670, %v696, 0.0
        %703 = vadd.xlane.f32.xlu0 %v702
        %v704 = vpop.xlane.xlu0 %703
        %v705 = vsel %vm670, %v697, 0.0
        %706 = vadd.xlane.f32.xlu0 %v705
        %v707 = vpop.xlane.xlu0 %706
        %v708 = vsel %vm670, %v698, 0.0
        %709 = vadd.xlane.f32.xlu0 %v708
        %v710 = vpop.xlane.xlu0 %709
        %s711 = scalar_lea.vmem %s311, 32 [#allocation2]
        %v712 = vld [vmem:[%s711] sm:$0xff]
        %v713 = vld [vmem:[%s711 + $0x8] sm:$0xff]
        %v714 = vld [vmem:[%s711 + $0x10] sm:$0xff]
        %v715 = vld [vmem:[%s711 + $0x18] sm:$0xff]
        %v716 = vmul.f32 %v712, 0.5
        %v717 = vmul.f32 %v713, 0.5
        %v718 = vmul.f32 %v714, 0.5
        %v719 = vmul.f32 %v715, 0.5
        %v720 = vtanh.pop %v716
        %v721 = vtanh.pop %v717
        %v722 = vtanh.pop %v718
        %v723 = vtanh.pop %v719
        %v724 = vmul.f32 %v720, 0.5
        %v725 = vmul.f32 %v721, 0.5
        %v726 = vmul.f32 %v722, 0.5
        %v727 = vmul.f32 %v723, 0.5
        %v728 = vadd.f32 %v724, 0.5
        %v729 = vadd.f32 %v725, 0.5
        %v730 = vadd.f32 %v726, 0.5
        %v731 = vadd.f32 %v727, 0.5
        %v732 = vmul.f32 %v666, %v728
        %v733 = vmul.f32 %v667, %v729
        %v734 = vmul.f32 %v668, %v730
        %v735 = vmul.f32 %v669, %v731
        %v736 = vsel %vm670, %v732, 0.0
        %737 = vadd.xlane.f32.xlu0 %v736
        %v738 = vpop.xlane.xlu0 %737
        %v739 = vsel %vm670, %v733, 0.0
        %740 = vadd.xlane.f32.xlu0 %v739
        %v741 = vpop.xlane.xlu0 %740
        %v742 = vsel %vm670, %v734, 0.0
        %743 = vadd.xlane.f32.xlu0 %v742
        %v744 = vpop.xlane.xlu0 %743
        %v745 = vsel %vm670, %v735, 0.0
        %746 = vadd.xlane.f32.xlu0 %v745
        %v747 = vpop.xlane.xlu0 %746
        %s748 = scalar_lea.vmem %s311, 64 [#allocation2]
        %v749 = vld [vmem:[%s748] sm:$0xff]
        %v750 = vld [vmem:[%s748 + $0x8] sm:$0xff]
        %v751 = vld [vmem:[%s748 + $0x10] sm:$0xff]
        %v752 = vld [vmem:[%s748 + $0x18] sm:$0xff]
        %v753 = vmul.f32 %v749, 0.5
        %v754 = vmul.f32 %v750, 0.5
        %v755 = vmul.f32 %v751, 0.5
        %v756 = vmul.f32 %v752, 0.5
        %v757 = vtanh.pop %v753
        %v758 = vtanh.pop %v754
        %v759 = vtanh.pop %v755
        %v760 = vtanh.pop %v756
        %v761 = vmul.f32 %v757, 0.5
        %v762 = vmul.f32 %v758, 0.5
        %v763 = vmul.f32 %v759, 0.5
        %v764 = vmul.f32 %v760, 0.5
        %v765 = vadd.f32 %v761, 0.5
        %v766 = vadd.f32 %v762, 0.5
        %v767 = vadd.f32 %v763, 0.5
        %v768 = vadd.f32 %v764, 0.5
        %v769 = vmul.f32 %v666, %v765
        %v770 = vmul.f32 %v667, %v766
        %v771 = vmul.f32 %v668, %v767
        %v772 = vmul.f32 %v669, %v768
        %v773 = vsel %vm670, %v769, 0.0
        %774 = vadd.xlane.f32.xlu0 %v773
        %v775 = vpop.xlane.xlu0 %774
        %v776 = vsel %vm670, %v770, 0.0
        %777 = vadd.xlane.f32.xlu0 %v776
        %v778 = vpop.xlane.xlu0 %777
        %v779 = vsel %vm670, %v771, 0.0
        %780 = vadd.xlane.f32.xlu0 %v779
        %v781 = vpop.xlane.xlu0 %780
        %v782 = vsel %vm670, %v772, 0.0
        %783 = vadd.xlane.f32.xlu0 %v782
        %v784 = vpop.xlane.xlu0 %783
        %v785 = vmul.f32 %v666, %v391
        %v786 = vmul.f32 %v667, %v392
        %v787 = vmul.f32 %v668, %v393
        %v788 = vmul.f32 %v669, %v394
        %v789 = vsel %vm670, %v785, 0.0
        %790 = vadd.xlane.f32.xlu0 %v789
        %v791 = vpop.xlane.xlu0 %790
        %v792 = vsel %vm670, %v786, 0.0
        %793 = vadd.xlane.f32.xlu0 %v792
        %v794 = vpop.xlane.xlu0 %793
        %v795 = vsel %vm670, %v787, 0.0
        %796 = vadd.xlane.f32.xlu0 %v795
        %v797 = vpop.xlane.xlu0 %796
        %v798 = vsel %vm670, %v788, 0.0
        %799 = vadd.xlane.f32.xlu0 %v798
        %v800 = vpop.xlane.xlu0 %799
        %v801 = vsel %vm670, %v666, 0.0
        %802 = vadd.xlane.f32.xlu0 %v801
        %v803 = vpop.xlane.xlu0 %802
        %v804 = vsel %vm670, %v667, 0.0
        %805 = vadd.xlane.f32.xlu0 %v804
        %v806 = vpop.xlane.xlu0 %805
        %v807 = vsel %vm670, %v668, 0.0
        %808 = vadd.xlane.f32.xlu0 %v807
        %v809 = vpop.xlane.xlu0 %808
        %v810 = vsel %vm670, %v669, 0.0
        %811 = vadd.xlane.f32.xlu0 %v810
        %v812 = vpop.xlane.xlu0 %811
        %v813 = vrcp.pop %v803
        %v814 = vmul.f32 %v803, %v813
        %v815 = vsub.f32 1.0, %v814
        %v816 = vmul.f32 %v813, %v815
        %v817 = vadd.f32 %v813, %v816
        %vm818 = vweird.f32 %v803
        %vm819 = vweird.f32 %v813
        %vm820 = vmor %vm818, %vm819
        %v821 = vsel %vm820, %v813, %v817
        %v822 = vand.u32 2147483647, %v803
        %vm823 = vcmp.eq.f32.partialorder %v822, 8.507059e+37
        %v824 = vand.u32 %v803, 2147483648
        %v825 = vor.u32 1.1754944e-38, %v824
        %v826 = vsel %vm823, %v825, %v821
        %v827 = vmul.f32 %v791, %v826
        %v828 = vrcp.pop %v806
        %v829 = vmul.f32 %v806, %v828
        %v830 = vsub.f32 1.0, %v829
        %v831 = vmul.f32 %v828, %v830
        %v832 = vadd.f32 %v828, %v831
        %vm833 = vweird.f32 %v806
        %vm834 = vweird.f32 %v828
        %vm835 = vmor %vm833, %vm834
        %v836 = vsel %vm835, %v828, %v832
        %v837 = vand.u32 2147483647, %v806
        %vm838 = vcmp.eq.f32.partialorder %v837, 8.507059e+37
        %v839 = vand.u32 %v806, 2147483648
        %v840 = vor.u32 1.1754944e-38, %v839
        %v841 = vsel %vm838, %v840, %v836
        %v842 = vmul.f32 %v794, %v841
        %v843 = vrcp.pop %v809
        %v844 = vmul.f32 %v809, %v843
        %v845 = vsub.f32 1.0, %v844
        %v846 = vmul.f32 %v843, %v845
        %v847 = vadd.f32 %v843, %v846
        %vm848 = vweird.f32 %v809
        %vm849 = vweird.f32 %v843
        %vm850 = vmor %vm848, %vm849
        %v851 = vsel %vm850, %v843, %v847
        %v852 = vand.u32 2147483647, %v809
        %vm853 = vcmp.eq.f32.partialorder %v852, 8.507059e+37
        %v854 = vand.u32 %v809, 2147483648
        %v855 = vor.u32 1.1754944e-38, %v854
        %v856 = vsel %vm853, %v855, %v851
        %v857 = vmul.f32 %v797, %v856
        %v858 = vrcp.pop %v812
        %v859 = vmul.f32 %v812, %v858
        %v860 = vsub.f32 1.0, %v859
        %v861 = vmul.f32 %v858, %v860
        %v862 = vadd.f32 %v858, %v861
        %vm863 = vweird.f32 %v812
        %vm864 = vweird.f32 %v858
        %vm865 = vmor %vm863, %vm864
        %v866 = vsel %vm865, %v858, %v862
        %v867 = vand.u32 2147483647, %v812
        %vm868 = vcmp.eq.f32.partialorder %v867, 8.507059e+37
        %v869 = vand.u32 %v812, 2147483648
        %v870 = vor.u32 1.1754944e-38, %v869
        %v871 = vsel %vm868, %v870, %v866
        %v872 = vmul.f32 %v800, %v871
        %v873 = vmax.f32 %v827, 1e-10
        %v874 = vmax.f32 %v842, 1e-10
        %v875 = vmax.f32 %v857, 1e-10
        %v876 = vmax.f32 %v872, 1e-10
        %v877 = vrcp.pop %v873
        %v878 = vmul.f32 %v873, %v877
        %v879 = vsub.f32 1.0, %v878
        %v880 = vmul.f32 %v877, %v879
        %v881 = vadd.f32 %v877, %v880
        %vm882 = vweird.f32 %v873
        %vm883 = vweird.f32 %v877
        %vm884 = vmor %vm882, %vm883
        %v885 = vsel %vm884, %v877, %v881
        %v886 = vand.u32 2147483647, %v873
        %vm887 = vcmp.eq.f32.partialorder %v886, 8.507059e+37
        %v888 = vand.u32 %v873, 2147483648
        %v889 = vor.u32 1.1754944e-38, %v888
        %v890 = vsel %vm887, %v889, %v885
        %v891 = vmul.f32 1.0, %v890
        %v892 = vrcp.pop %v874
        %v893 = vmul.f32 %v874, %v892
        %v894 = vsub.f32 1.0, %v893
        %v895 = vmul.f32 %v892, %v894
        %v896 = vadd.f32 %v892, %v895
        %vm897 = vweird.f32 %v874
        %vm898 = vweird.f32 %v892
        %vm899 = vmor %vm897, %vm898
        %v900 = vsel %vm899, %v892, %v896
        %v901 = vand.u32 2147483647, %v874
        %vm902 = vcmp.eq.f32.partialorder %v901, 8.507059e+37
        %v903 = vand.u32 %v874, 2147483648
        %v904 = vor.u32 1.1754944e-38, %v903
        %v905 = vsel %vm902, %v904, %v900
        %v906 = vmul.f32 1.0, %v905
        %v907 = vrcp.pop %v875
        %v908 = vmul.f32 %v875, %v907
        %v909 = vsub.f32 1.0, %v908
        %v910 = vmul.f32 %v907, %v909
        %v911 = vadd.f32 %v907, %v910
        %vm912 = vweird.f32 %v875
        %vm913 = vweird.f32 %v907
        %vm914 = vmor %vm912, %vm913
        %v915 = vsel %vm914, %v907, %v911
        %v916 = vand.u32 2147483647, %v875
        %vm917 = vcmp.eq.f32.partialorder %v916, 8.507059e+37
        %v918 = vand.u32 %v875, 2147483648
        %v919 = vor.u32 1.1754944e-38, %v918
        %v920 = vsel %vm917, %v919, %v915
        %v921 = vmul.f32 1.0, %v920
        %v922 = vrcp.pop %v876
        %v923 = vmul.f32 %v876, %v922
        %v924 = vsub.f32 1.0, %v923
        %v925 = vmul.f32 %v922, %v924
        %v926 = vadd.f32 %v922, %v925
        %vm927 = vweird.f32 %v876
        %vm928 = vweird.f32 %v922
        %vm929 = vmor %vm927, %vm928
        %v930 = vsel %vm929, %v922, %v926
        %v931 = vand.u32 2147483647, %v876
        %vm932 = vcmp.eq.f32.partialorder %v931, 8.507059e+37
        %v933 = vand.u32 %v876, 2147483648
        %v934 = vor.u32 1.1754944e-38, %v933
        %v935 = vsel %vm932, %v934, %v930
        %v936 = vmul.f32 1.0, %v935
        %v937 = vsel %vm512, %v701, %v738
        %v938 = vsel %vm512, %v704, %v741
        %v939 = vsel %vm512, %v707, %v744
        %v940 = vsel %vm512, %v710, %v747
        %v941 = vsel %vm557, %v937, %v775
        %v942 = vsel %vm557, %v938, %v778
        %v943 = vsel %vm557, %v939, %v781
        %v944 = vsel %vm557, %v940, %v784
        %vm945 = vcmask 23552
        %v946 = vsel %vm945, %v941, %v791
        %v947 = vsel %vm945, %v942, %v794
        %v948 = vsel %vm945, %v943, %v797
        %v949 = vsel %vm945, %v944, %v800
        %v950 = vsel %vm582, %v946, %v803
        %v951 = vsel %vm582, %v947, %v806
        %v952 = vsel %vm582, %v948, %v809
        %v953 = vsel %vm582, %v949, %v812
        %vm954 = vcmask 39936
        %v955 = vsel %vm954, %v950, %v891
        %v956 = vsel %vm954, %v951, %v906
        %v957 = vsel %vm954, %v952, %v921
        %v958 = vsel %vm954, %v953, %v936
        %vm959 = vcmask 48128
        %v960 = vsel %vm959, %v955, 0.0
        %v961 = vsel %vm959, %v956, 0.0
        %v962 = vsel %vm959, %v957, 0.0
        %v963 = vsel %vm959, %v958, 0.0
        %964 = vst.msk [vmem:[%s385] sm:$0xff] %vm607, %v960
        %965 = vst.msk [vmem:[%s385 + $0x8] sm:$0xff] %vm607, %v961
        %966 = vst.msk [vmem:[%s385 + $0x10] sm:$0xff] %vm607, %v962
        %967 = vst.msk [vmem:[%s385 + $0x18] sm:$0xff] %vm607, %v963
        %s968 = smul.u32 4, %s17
        %p969 = scmp.lt.s32.totalorder %s968, 15
        %s970 = scalar_select %p969, %s968, 15
        %s971 = smul.addr %s970, 8
        %s972 = scalar_lea.vmem %s4, %s971
        %s973 = smul.u32 4, %s17
        %p974 = scmp.lt.s32.totalorder %s973, 15
        %s975 = scalar_select %p974, %s973, 15
        %s976 = smul.addr %s975, 8
        %s977 = scalar_lea.vmem %s5, %s976
        // Predicated region
        $region75: #{tpu_custom_call.1} parent=69 // pred_check
          %p978 = pneg %p139
        $region76: #{tpu_custom_call.1} parent=69 // pred_check_branch
          %980 = sbr.rel (%p978) target = $region78
        $region77: #{tpu_custom_call.1} parent=69 // pred_region
          %s981 = smul.u32 4, %s17
        $region78: #{tpu_custom_call.1} parent=69 // pred_fallthru
          _
        // Predicated region
        $region79: #{tpu_custom_call.1} parent=69 // pred_check
          %p982 = pneg %p165
        $region80: #{tpu_custom_call.1} parent=69 // pred_check_branch
          %984 = sbr.rel (%p982) target = $region82
        $region81: #{tpu_custom_call.1} parent=69 // pred_region
          %s985 = smul.u32 4, %s17
        $region82: #{tpu_custom_call.1} parent=69 // pred_fallthru
          _
      $region70: #{tpu_custom_call.1} parent=5 // pred_fallthru
        _
      %p986 = scmp.le.s32.totalorder 2, %s12
      // Predicated region
      $region83: #{tpu_custom_call.1} parent=5 // pred_check
        %p987 = pneg %p986
      $region84: #{tpu_custom_call.1} parent=5 // pred_check_branch
        %989 = sbr.rel (%p987) target = $region86
      $region85: #{tpu_custom_call.1} parent=5 // pred_region
        %s990 = ssub.s32 %s12, 2
        // Predicated region
        $region87: #{tpu_custom_call.1} parent=85 // pred_check
          %p991 = pneg %p145
        $region88: #{tpu_custom_call.1} parent=85 // pred_check_branch
          %993 = sbr.rel (%p991) target = $region90
        $region89: #{tpu_custom_call.1} parent=85 // pred_region
          %s994 = smul.u32 4, %s18
          %p995 = scmp.lt.s32.totalorder %s994, 15
          %s996 = scalar_select %p995, %s994, 15
          %s997 = smul.addr %s996, 8
          %s998 = scalar_lea.vmem %s4, %s997
        $region90: #{tpu_custom_call.1} parent=85 // pred_fallthru
          _
        // Predicated region
        $region91: #{tpu_custom_call.1} parent=85 // pred_check
          %p999 = pneg %p171
        $region92: #{tpu_custom_call.1} parent=85 // pred_check_branch
          %1001 = sbr.rel (%p999) target = $region94
        $region93: #{tpu_custom_call.1} parent=85 // pred_region
          %s1002 = smul.u32 4, %s18
          %p1003 = scmp.lt.s32.totalorder %s1002, 15
          %s1004 = scalar_select %p1003, %s1002, 15
          %s1005 = smul.addr %s1004, 8
          %s1006 = scalar_lea.vmem %s5, %s1005
        $region94: #{tpu_custom_call.1} parent=85 // pred_fallthru
          _
      $region86: #{tpu_custom_call.1} parent=5 // pred_fallthru
        _
    $region6: #{tpu_custom_call.1} parent=1 // loop_footer
      %s16 = sadd.s32 1, %s12
    $region7: #{tpu_custom_call.1} parent=1 // loop_footer_branch
      %11 = sbr.rel target = $region3
    $region8: #{tpu_custom_call.1} parent=1 // loop_exit
      _

</llo_original>
